<compile_context>
chip_gen: v7x
topology: tpu7x:2x2x1
jax: 0.10.0
libtpu: 0.0.40
codegen_flags: <defaults>
</compile_context>

<pallas_src>
import numpy as np
import jax
import jax.numpy as jnp
from jax.experimental import pallas as pl
from jax.experimental.pallas import tpu as pltpu

_EPS = 1e-12        # matches torch.nn.functional.normalize default eps
_LANES = 128
_TILE_R_MAX = 256   # 256 rows x 128 lanes = 32768 faces / grid step


def _nvl_kernel(slab_ref, mask_ref, out_ref):
    # slab_ref: (12, TR, 128) planes = [e1o xyz, e2o xyz, e1g xyz, e2g xyz]
    #   e1o = o1-o0, e2o = o2-o0, e1g = g1-g0, e2g = g2-g0
    # mask_ref: (TR, 128)      precomputed valid[f0]*valid[f1]*valid[f2]
    # out_ref:  (3, TR, 128)   rows = (cos1, cos2, cos3)
    def vec(base):
        return (slab_ref[base], slab_ref[base + 1], slab_ref[base + 2])

    def normalize(v):
        x, y, z = v
        # 1/sqrt(max(s, eps^2)) == 1/max(||v||, eps)  (F.normalize semantics)
        inv = jax.lax.rsqrt(jnp.maximum(x * x + y * y + z * z, _EPS * _EPS))
        return (x * inv, y * inv, z * inv)

    def cross(a, b):
        ax, ay, az = a
        bx, by, bz = b
        return (ay * bz - az * by, az * bx - ax * bz, ax * by - ay * bx)

    def dot(a, b):
        return a[0] * b[0] + a[1] * b[1] + a[2] * b[2]

    # GT face normal first: gt-plane live ranges end before out edges load.
    n_gt = normalize(cross(normalize(vec(6)), normalize(vec(9))))

    e1 = vec(0)                     # o1 - o0
    e2 = vec(3)                     # o2 - o0
    v1 = normalize(e1)
    v2 = normalize(e2)
    v3 = normalize((e2[0] - e1[0], e2[1] - e1[1], e2[2] - e1[2]))  # o2 - o1

    m = mask_ref[...]
    out_ref[0] = jnp.abs(dot(v1, n_gt)) * m
    out_ref[1] = jnp.abs(dot(v2, n_gt)) * m
    out_ref[2] = jnp.abs(dot(v3, n_gt)) * m


def normal_vector_loss(face, coord_out, coord_gt, valid):
    """face: (F, 3) int32, coord_out/coord_gt: (B, V, 3), valid: (B, V, 1).

    Returns loss of shape (B, 3*F, 1), identical semantics to the PyTorch
    NormalVectorLoss.forward.
    """
    B = coord_out.shape[0]
    Fn = face.shape[0]

    # --- lane-dense padded layout: F faces -> rows x 128 lanes ---------------
    rows = max(8, pl.cdiv(Fn, _LANES))
    rows = ((rows + 7) // 8) * 8                       # multiple of 8 sublanes
    n_tiles = pl.cdiv(rows, _TILE_R_MAX)
    tile_r = ((pl.cdiv(rows, n_tiles) + 7) // 8) * 8   # balanced, <= 256, mult of 8
    rows = n_tiles * tile_r
    f_total = rows * _LANES
    pad = f_total - Fn

    # --- pad the index arrays (NOT the slab); padded faces point at vertex 0.
    f = jnp.pad(face.astype(jnp.int32), ((0, pad), (0, 0)))
    f0, f1, f2 = f[:, 0], f[:, 1], f[:, 2]

    # --- component-major coords, gather along the last axis -------------------
    # TODO(synk): the face gather itself runs in XLA; a Pallas DMA-gather would
    # need scalar-prefetched indices and is not worth it for this op.
    co = jnp.transpose(coord_out.astype(jnp.float32), (0, 2, 1))   # (B, 3, V)
    cg = jnp.transpose(coord_gt.astype(jnp.float32), (0, 2, 1))    # (B, 3, V)

    e1o = co[:, :, f1] - co[:, :, f0]                  # (B, 3, f_total)
    e2o = co[:, :, f2] - co[:, :, f0]
    e1g = cg[:, :, f1] - cg[:, :, f0]
    e2g = cg[:, :, f2] - cg[:, :, f0]
    slab = jnp.concatenate([e1o, e2o, e1g, e2g], axis=1)           # (B, 12, f_total)
    slab = slab.reshape(B, 12, rows, _LANES)

    # --- single precomputed validity mask (B, rows, 128) ----------------------
    vf = valid[..., 0].astype(jnp.float32)                         # (B, V)
    vm = (vf[:, f0] * vf[:, f1] * vf[:, f2]).reshape(B, rows, _LANES)

    grid = (B, n_tiles)

    out = pl.pallas_call(
        _nvl_kernel,
        out_shape=jax.ShapeDtypeStruct((B, 3, rows, _LANES), jnp.float32),
        grid=grid,
        in_specs=[
            pl.BlockSpec((None, 12, tile_r, _LANES), lambda b, t: (b, 0, t, 0)),
            pl.BlockSpec((None, tile_r, _LANES), lambda b, t: (b, t, 0)),
        ],
        out_specs=pl.BlockSpec((None, 3, tile_r, _LANES),
                               lambda b, t: (b, 0, t, 0)),
        compiler_params=pltpu.CompilerParams(
            dimension_semantics=("parallel", "parallel")),
    )(slab, vm)

    # (B, 3, rows, 128) -> (B, 3, f_total) -> trim -> (B, 3F, 1)
    # row-major reshape == torch.cat((cos1, cos2, cos3), dim=1)
    return out.reshape(B, 3, f_total)[:, :, :Fn].reshape(B, 3 * Fn, 1)


def _reference_loss(face, coord_out, coord_gt, valid):
    # Pure-JAX reference mirroring the PyTorch module, for a sanity check.
    def norm(v):
        return v / jnp.maximum(
            jnp.linalg.norm(v, axis=2, keepdims=True), _EPS)

    f0, f1, f2 = face[:, 0], face[:, 1], face[:, 2]
    v1o = norm(coord_out[:, f1] - coord_out[:, f0])
    v2o = norm(coord_out[:, f2] - coord_out[:, f0])
    v3o = norm(coord_out[:, f2] - coord_out[:, f1])
    v1g = norm(coord_gt[:, f1] - coord_gt[:, f0])
    v2g = norm(coord_gt[:, f2] - coord_gt[:, f0])
    ng = norm(jnp.cross(v1g, v2g, axis=2))
    vm = valid[:, f0] * valid[:, f1] * valid[:, f2]
    cos1 = jnp.abs(jnp.sum(v1o * ng, 2, keepdims=True)) * vm
    cos2 = jnp.abs(jnp.sum(v2o * ng, 2, keepdims=True)) * vm
    cos3 = jnp.abs(jnp.sum(v3o * ng, 2, keepdims=True)) * vm
    return jnp.concatenate([cos1, cos2, cos3], 1)


def _make_faces(key, Fn, V):
    # Proper mesh connectivity: 3 DISTINCT vertex indices per face.  (Degenerate
    # faces make the normalized GT cross-product pure rounding noise, which is
    # ill-defined in the original PyTorch module as well.)
    kb, k1, k2 = jax.random.split(key, 3)
    base = jax.random.randint(kb, (Fn,), 0, V, dtype=jnp.int32)
    o1 = jax.random.randint(k1, (Fn,), 1, V, dtype=jnp.int32)
    o2 = jax.random.randint(k2, (Fn,), 1, V - 1, dtype=jnp.int32)
    o2 = o2 + (o2 >= o1).astype(jnp.int32)          # o2 != o1, both in [1, V)
    return jnp.stack([base, (base + o1) % V, (base + o2) % V], axis=1)


if __name__ == "__main__":
    key = jax.random.PRNGKey(0)

    for B, V, Fn in ((2, 32, 64), (2, 32, 200)):
        key, k_face, k_out, k_gt, k_valid = jax.random.split(key, 5)

        face = _make_faces(k_face, Fn, V)
        coord_out = jax.random.normal(k_out, (B, V, 3), dtype=jnp.float32)
        coord_gt = jax.random.normal(k_gt, (B, V, 3), dtype=jnp.float32)
        valid = (jax.random.uniform(k_valid, (B, V, 1)) > 0.2).astype(
            jnp.float32)

        loss = normal_vector_loss(face, coord_out, coord_gt, valid)
        loss = jax.block_until_ready(loss)

        ref = _reference_loss(face, coord_out, coord_gt, valid)
        assert loss.shape == (B, 3 * Fn, 1), loss.shape
        np.testing.assert_allclose(np.asarray(loss), np.asarray(ref),
                                   rtol=1e-3, atol=1e-4)

    print("KERNEL_OK")
</pallas_src>

<mosaic_0001>
module attributes {stable_mosaic.version = 11 : i64} {
  func.func @_nvl_kernel(%arg0: i32, %arg1: i32, %arg2: memref<1x12x8x128xf32, #tpu.memory_space<vmem>>, %arg3: memref<1x8x128xf32, #tpu.memory_space<vmem>>, %arg4: memref<1x3x8x128xf32, #tpu.memory_space<vmem>>) attributes {dimension_semantics = [#tpu.dimension_semantics<parallel>, #tpu.dimension_semantics<parallel>], iteration_bounds = array<i64: 2, 1>, scalar_prefetch = 0 : i64, scratch_operands = 0 : i64, tpu.core_type = #tpu.core_type<tc>, window_params = [{transform_indices = @transform_0, window_bounds = array<i64: 1, 12, 8, 128>}, {transform_indices = @transform_1, window_bounds = array<i64: 1, 8, 128>}, {transform_indices = @transform_2, window_bounds = array<i64: 1, 3, 8, 128>}]} {
    %c0 = arith.constant 0 : index
    %c6 = arith.constant 6 : index
    %c0_0 = arith.constant 0 : index
    %c0_1 = arith.constant 0 : index
    %0 = vector.load %arg2[%c0, %c6, %c0_0, %c0_1] : memref<1x12x8x128xf32, #tpu.memory_space<vmem>>, vector<1x1x8x128xf32>
    %1 = vector.shape_cast %0 : vector<1x1x8x128xf32> to vector<8x128xf32>
    %c0_2 = arith.constant 0 : index
    %c7 = arith.constant 7 : index
    %c0_3 = arith.constant 0 : index
    %c0_4 = arith.constant 0 : index
    %2 = vector.load %arg2[%c0_2, %c7, %c0_3, %c0_4] : memref<1x12x8x128xf32, #tpu.memory_space<vmem>>, vector<1x1x8x128xf32>
    %3 = vector.shape_cast %2 : vector<1x1x8x128xf32> to vector<8x128xf32>
    %c0_5 = arith.constant 0 : index
    %c8 = arith.constant 8 : index
    %c0_6 = arith.constant 0 : index
    %c0_7 = arith.constant 0 : index
    %4 = vector.load %arg2[%c0_5, %c8, %c0_6, %c0_7] : memref<1x12x8x128xf32, #tpu.memory_space<vmem>>, vector<1x1x8x128xf32>
    %5 = vector.shape_cast %4 : vector<1x1x8x128xf32> to vector<8x128xf32>
    %6 = arith.mulf %1, %1 : vector<8x128xf32>
    %7 = arith.mulf %3, %3 : vector<8x128xf32>
    %8 = arith.addf %6, %7 : vector<8x128xf32>
    %9 = arith.mulf %5, %5 : vector<8x128xf32>
    %10 = arith.addf %8, %9 : vector<8x128xf32>
    %cst = arith.constant 1.000000e-24 : f32
    %11 = vector.broadcast %cst : f32 to vector<8x128xf32>
    %12 = arith.maximumf %10, %11 : vector<8x128xf32>
    %13 = math.rsqrt %12 : vector<8x128xf32>
    %14 = arith.mulf %1, %13 : vector<8x128xf32>
    %15 = arith.mulf %3, %13 : vector<8x128xf32>
    %16 = arith.mulf %5, %13 : vector<8x128xf32>
    %c0_8 = arith.constant 0 : index
    %c9 = arith.constant 9 : index
    %c0_9 = arith.constant 0 : index
    %c0_10 = arith.constant 0 : index
    %17 = vector.load %arg2[%c0_8, %c9, %c0_9, %c0_10] : memref<1x12x8x128xf32, #tpu.memory_space<vmem>>, vector<1x1x8x128xf32>
    %18 = vector.shape_cast %17 : vector<1x1x8x128xf32> to vector<8x128xf32>
    %c0_11 = arith.constant 0 : index
    %c10 = arith.constant 10 : index
    %c0_12 = arith.constant 0 : index
    %c0_13 = arith.constant 0 : index
    %19 = vector.load %arg2[%c0_11, %c10, %c0_12, %c0_13] : memref<1x12x8x128xf32, #tpu.memory_space<vmem>>, vector<1x1x8x128xf32>
    %20 = vector.shape_cast %19 : vector<1x1x8x128xf32> to vector<8x128xf32>
    %c0_14 = arith.constant 0 : index
    %c11 = arith.constant 11 : index
    %c0_15 = arith.constant 0 : index
    %c0_16 = arith.constant 0 : index
    %21 = vector.load %arg2[%c0_14, %c11, %c0_15, %c0_16] : memref<1x12x8x128xf32, #tpu.memory_space<vmem>>, vector<1x1x8x128xf32>
    %22 = vector.shape_cast %21 : vector<1x1x8x128xf32> to vector<8x128xf32>
    %23 = arith.mulf %18, %18 : vector<8x128xf32>
    %24 = arith.mulf %20, %20 : vector<8x128xf32>
    %25 = arith.addf %23, %24 : vector<8x128xf32>
    %26 = arith.mulf %22, %22 : vector<8x128xf32>
    %27 = arith.addf %25, %26 : vector<8x128xf32>
    %cst_17 = arith.constant 1.000000e-24 : f32
    %28 = vector.broadcast %cst_17 : f32 to vector<8x128xf32>
    %29 = arith.maximumf %27, %28 : vector<8x128xf32>
    %30 = math.rsqrt %29 : vector<8x128xf32>
    %31 = arith.mulf %18, %30 : vector<8x128xf32>
    %32 = arith.mulf %20, %30 : vector<8x128xf32>
    %33 = arith.mulf %22, %30 : vector<8x128xf32>
    %34 = arith.mulf %15, %33 : vector<8x128xf32>
    %35 = arith.mulf %16, %32 : vector<8x128xf32>
    %36 = arith.subf %34, %35 : vector<8x128xf32>
    %37 = arith.mulf %16, %31 : vector<8x128xf32>
    %38 = arith.mulf %14, %33 : vector<8x128xf32>
    %39 = arith.subf %37, %38 : vector<8x128xf32>
    %40 = arith.mulf %14, %32 : vector<8x128xf32>
    %41 = arith.mulf %15, %31 : vector<8x128xf32>
    %42 = arith.subf %40, %41 : vector<8x128xf32>
    %43 = arith.mulf %36, %36 : vector<8x128xf32>
    %44 = arith.mulf %39, %39 : vector<8x128xf32>
    %45 = arith.addf %43, %44 : vector<8x128xf32>
    %46 = arith.mulf %42, %42 : vector<8x128xf32>
    %47 = arith.addf %45, %46 : vector<8x128xf32>
    %cst_18 = arith.constant 1.000000e-24 : f32
    %48 = vector.broadcast %cst_18 : f32 to vector<8x128xf32>
    %49 = arith.maximumf %47, %48 : vector<8x128xf32>
    %50 = math.rsqrt %49 : vector<8x128xf32>
    %51 = arith.mulf %36, %50 : vector<8x128xf32>
    %52 = arith.mulf %39, %50 : vector<8x128xf32>
    %53 = arith.mulf %42, %50 : vector<8x128xf32>
    %c0_19 = arith.constant 0 : index
    %c0_20 = arith.constant 0 : index
    %c0_21 = arith.constant 0 : index
    %c0_22 = arith.constant 0 : index
    %54 = vector.load %arg2[%c0_19, %c0_20, %c0_21, %c0_22] : memref<1x12x8x128xf32, #tpu.memory_space<vmem>>, vector<1x1x8x128xf32>
    %55 = vector.shape_cast %54 : vector<1x1x8x128xf32> to vector<8x128xf32>
    %c0_23 = arith.constant 0 : index
    %c1 = arith.constant 1 : index
    %c0_24 = arith.constant 0 : index
    %c0_25 = arith.constant 0 : index
    %56 = vector.load %arg2[%c0_23, %c1, %c0_24, %c0_25] : memref<1x12x8x128xf32, #tpu.memory_space<vmem>>, vector<1x1x8x128xf32>
    %57 = vector.shape_cast %56 : vector<1x1x8x128xf32> to vector<8x128xf32>
    %c0_26 = arith.constant 0 : index
    %c2 = arith.constant 2 : index
    %c0_27 = arith.constant 0 : index
    %c0_28 = arith.constant 0 : index
    %58 = vector.load %arg2[%c0_26, %c2, %c0_27, %c0_28] : memref<1x12x8x128xf32, #tpu.memory_space<vmem>>, vector<1x1x8x128xf32>
    %59 = vector.shape_cast %58 : vector<1x1x8x128xf32> to vector<8x128xf32>
    %c0_29 = arith.constant 0 : index
    %c3 = arith.constant 3 : index
    %c0_30 = arith.constant 0 : index
    %c0_31 = arith.constant 0 : index
    %60 = vector.load %arg2[%c0_29, %c3, %c0_30, %c0_31] : memref<1x12x8x128xf32, #tpu.memory_space<vmem>>, vector<1x1x8x128xf32>
    %61 = vector.shape_cast %60 : vector<1x1x8x128xf32> to vector<8x128xf32>
    %c0_32 = arith.constant 0 : index
    %c4 = arith.constant 4 : index
    %c0_33 = arith.constant 0 : index
    %c0_34 = arith.constant 0 : index
    %62 = vector.load %arg2[%c0_32, %c4, %c0_33, %c0_34] : memref<1x12x8x128xf32, #tpu.memory_space<vmem>>, vector<1x1x8x128xf32>
    %63 = vector.shape_cast %62 : vector<1x1x8x128xf32> to vector<8x128xf32>
    %c0_35 = arith.constant 0 : index
    %c5 = arith.constant 5 : index
    %c0_36 = arith.constant 0 : index
    %c0_37 = arith.constant 0 : index
    %64 = vector.load %arg2[%c0_35, %c5, %c0_36, %c0_37] : memref<1x12x8x128xf32, #tpu.memory_space<vmem>>, vector<1x1x8x128xf32>
    %65 = vector.shape_cast %64 : vector<1x1x8x128xf32> to vector<8x128xf32>
    %66 = arith.mulf %55, %55 : vector<8x128xf32>
    %67 = arith.mulf %57, %57 : vector<8x128xf32>
    %68 = arith.addf %66, %67 : vector<8x128xf32>
    %69 = arith.mulf %59, %59 : vector<8x128xf32>
    %70 = arith.addf %68, %69 : vector<8x128xf32>
    %cst_38 = arith.constant 1.000000e-24 : f32
    %71 = vector.broadcast %cst_38 : f32 to vector<8x128xf32>
    %72 = arith.maximumf %70, %71 : vector<8x128xf32>
    %73 = math.rsqrt %72 : vector<8x128xf32>
    %74 = arith.mulf %55, %73 : vector<8x128xf32>
    %75 = arith.mulf %57, %73 : vector<8x128xf32>
    %76 = arith.mulf %59, %73 : vector<8x128xf32>
    %77 = arith.mulf %61, %61 : vector<8x128xf32>
    %78 = arith.mulf %63, %63 : vector<8x128xf32>
    %79 = arith.addf %77, %78 : vector<8x128xf32>
    %80 = arith.mulf %65, %65 : vector<8x128xf32>
    %81 = arith.addf %79, %80 : vector<8x128xf32>
    %cst_39 = arith.constant 1.000000e-24 : f32
    %82 = vector.broadcast %cst_39 : f32 to vector<8x128xf32>
    %83 = arith.maximumf %81, %82 : vector<8x128xf32>
    %84 = math.rsqrt %83 : vector<8x128xf32>
    %85 = arith.mulf %61, %84 : vector<8x128xf32>
    %86 = arith.mulf %63, %84 : vector<8x128xf32>
    %87 = arith.mulf %65, %84 : vector<8x128xf32>
    %88 = arith.subf %61, %55 : vector<8x128xf32>
    %89 = arith.subf %63, %57 : vector<8x128xf32>
    %90 = arith.subf %65, %59 : vector<8x128xf32>
    %91 = arith.mulf %88, %88 : vector<8x128xf32>
    %92 = arith.mulf %89, %89 : vector<8x128xf32>
    %93 = arith.addf %91, %92 : vector<8x128xf32>
    %94 = arith.mulf %90, %90 : vector<8x128xf32>
    %95 = arith.addf %93, %94 : vector<8x128xf32>
    %cst_40 = arith.constant 1.000000e-24 : f32
    %96 = vector.broadcast %cst_40 : f32 to vector<8x128xf32>
    %97 = arith.maximumf %95, %96 : vector<8x128xf32>
    %98 = math.rsqrt %97 : vector<8x128xf32>
    %99 = arith.mulf %88, %98 : vector<8x128xf32>
    %100 = arith.mulf %89, %98 : vector<8x128xf32>
    %101 = arith.mulf %90, %98 : vector<8x128xf32>
    %c0_41 = arith.constant 0 : index
    %c0_42 = arith.constant 0 : index
    %c0_43 = arith.constant 0 : index
    %102 = vector.load %arg3[%c0_41, %c0_42, %c0_43] : memref<1x8x128xf32, #tpu.memory_space<vmem>>, vector<1x8x128xf32>
    %103 = vector.shape_cast %102 : vector<1x8x128xf32> to vector<8x128xf32>
    %104 = arith.mulf %74, %51 : vector<8x128xf32>
    %105 = arith.mulf %75, %52 : vector<8x128xf32>
    %106 = arith.addf %104, %105 : vector<8x128xf32>
    %107 = arith.mulf %76, %53 : vector<8x128xf32>
    %108 = arith.addf %106, %107 : vector<8x128xf32>
    %109 = math.absf %108 : vector<8x128xf32>
    %110 = arith.mulf %109, %103 : vector<8x128xf32>
    %c0_44 = arith.constant 0 : index
    %c0_45 = arith.constant 0 : index
    %c0_46 = arith.constant 0 : index
    %c0_47 = arith.constant 0 : index
    %111 = vector.load %arg4[%c0_44, %c0_45, %c0_46, %c0_47] : memref<1x3x8x128xf32, #tpu.memory_space<vmem>>, vector<1x1x8x128xf32>
    %112 = vector.shape_cast %111 : vector<1x1x8x128xf32> to vector<8x128xf32>
    %113 = vector.shape_cast %110 : vector<8x128xf32> to vector<1x1x8x128xf32>
    tpu.vector_store %arg4[%c0_44, %c0_45, %c0_46, %c0_47], %113 {strides = array<i32>} : memref<1x3x8x128xf32, #tpu.memory_space<vmem>>, vector<1x1x8x128xf32>,
    %114 = arith.mulf %85, %51 : vector<8x128xf32>
    %115 = arith.mulf %86, %52 : vector<8x128xf32>
    %116 = arith.addf %114, %115 : vector<8x128xf32>
    %117 = arith.mulf %87, %53 : vector<8x128xf32>
    %118 = arith.addf %116, %117 : vector<8x128xf32>
    %119 = math.absf %118 : vector<8x128xf32>
    %120 = arith.mulf %119, %103 : vector<8x128xf32>
    %c0_48 = arith.constant 0 : index
    %c1_49 = arith.constant 1 : index
    %c0_50 = arith.constant 0 : index
    %c0_51 = arith.constant 0 : index
    %121 = vector.load %arg4[%c0_48, %c1_49, %c0_50, %c0_51] : memref<1x3x8x128xf32, #tpu.memory_space<vmem>>, vector<1x1x8x128xf32>
    %122 = vector.shape_cast %121 : vector<1x1x8x128xf32> to vector<8x128xf32>
    %123 = vector.shape_cast %120 : vector<8x128xf32> to vector<1x1x8x128xf32>
    tpu.vector_store %arg4[%c0_48, %c1_49, %c0_50, %c0_51], %123 {strides = array<i32>} : memref<1x3x8x128xf32, #tpu.memory_space<vmem>>, vector<1x1x8x128xf32>,
    %124 = arith.mulf %99, %51 : vector<8x128xf32>
    %125 = arith.mulf %100, %52 : vector<8x128xf32>
    %126 = arith.addf %124, %125 : vector<8x128xf32>
    %127 = arith.mulf %101, %53 : vector<8x128xf32>
    %128 = arith.addf %126, %127 : vector<8x128xf32>
    %129 = math.absf %128 : vector<8x128xf32>
    %130 = arith.mulf %129, %103 : vector<8x128xf32>
    %c0_52 = arith.constant 0 : index
    %c2_53 = arith.constant 2 : index
    %c0_54 = arith.constant 0 : index
    %c0_55 = arith.constant 0 : index
    %131 = vector.load %arg4[%c0_52, %c2_53, %c0_54, %c0_55] : memref<1x3x8x128xf32, #tpu.memory_space<vmem>>, vector<1x1x8x128xf32>
    %132 = vector.shape_cast %131 : vector<1x1x8x128xf32> to vector<8x128xf32>
    %133 = vector.shape_cast %130 : vector<8x128xf32> to vector<1x1x8x128xf32>
    tpu.vector_store %arg4[%c0_52, %c2_53, %c0_54, %c0_55], %133 {strides = array<i32>} : memref<1x3x8x128xf32, #tpu.memory_space<vmem>>, vector<1x1x8x128xf32>,
    return
  }
  func.func @transform_0(%arg0: i32, %arg1: i32) -> (i32, i32, i32, i32) {
    %c0_i32 = arith.constant 0 : i32
    %c0_i32_0 = arith.constant 0 : i32
    %c0_i32_1 = arith.constant 0 : i32
    return %arg0, %c0_i32, %arg1, %c0_i32_0 : i32, i32, i32, i32
  }
  func.func @transform_1(%arg0: i32, %arg1: i32) -> (i32, i32, i32) {
    %c0_i32 = arith.constant 0 : i32
    %c0_i32_0 = arith.constant 0 : i32
    return %arg0, %arg1, %c0_i32 : i32, i32, i32
  }
  func.func @transform_2(%arg0: i32, %arg1: i32) -> (i32, i32, i32, i32) {
    %c0_i32 = arith.constant 0 : i32
    %c0_i32_0 = arith.constant 0 : i32
    %c0_i32_1 = arith.constant 0 : i32
    return %arg0, %c0_i32, %arg1, %c0_i32_0 : i32, i32, i32, i32
  }
}

</mosaic_0001>

<llo_original>
// kernel: tpu_custom_call.1
$region0: #{tpu_custom_call.1}
  #allocation0 [shape = 'u32[]', space=smem, size = 0x4, offset = 0x4, fixed_abs, tag = 'smem constant byte address 0x4 - core index']
  #allocation1 [shape = 'u32[144,128]{1,0:T(1,128)}', space=vmem, size = 0x12000, scoped, tag = 'internal scratch']
  %s0 = inlined_call_operand.hbm [shape: f32[2,12,8,128], index: 0, kind: input, shape index: {}]
  %s1 = inlined_call_operand.hbm [shape: f32[2,8,128], index: 1, kind: input, shape index: {}]
  %s2 = inlined_call_operand.hbm [shape: f32[2,3,8,128], index: 2, kind: output, shape index: {}]
  %s3 = sld [smem:[#allocation0]]
  $region49: #{tpu_custom_call.1} parent=0
    _
  %s5 = ssub.s32 1, %s3
  %s6 = scalar_select 0, %s5, %s3
  $region1: #{tpu_custom_call.1} parent=0
    #allocation2 [shape = 'u8[98304]{0}', space=vmem, size = 0x18000, scoped, tag = 'input window, operand 0']
    #allocation3 [shape = 's32[2]{0}', space=sflag, size = 0x8, scoped, tag = 'scoped memory for tpu_custom_call.1']
    #allocation4 [shape = 's32[2]{0}', space=sflag, size = 0x8, scoped, tag = 'scoped memory for tpu_custom_call.1']
    #allocation5 [shape = 'u8[8192]{0}', space=vmem, size = 0x2000, scoped, tag = 'input window, operand 1']
    #allocation6 [shape = 's32[2]{0}', space=sflag, size = 0x8, scoped, tag = 'scoped memory for tpu_custom_call.1']
    #allocation7 [shape = 'u8[24576]{0}', space=vmem, size = 0x6000, scoped, tag = 'output window, operand 0']
    %7 = vsyncpa [#allocation3], 0
    %s8 = scalar_lea.sflag [#allocation3], 1
    %9 = vsyncpa %s8, 0
    %10 = vsyncpa [#allocation6], 0
    %s11 = scalar_lea.sflag [#allocation6], 1
    %12 = vsyncpa %s11, 0
    %13 = vsyncpa [#allocation4], 0
    %s14 = scalar_lea.sflag [#allocation4], 1
    %15 = vsyncpa %s14, 0
    loop: start=0, step=1, limit=4
    $region2: #{tpu_custom_call.1} parent=1 // loop_pre_header
      _
    $region3: #{tpu_custom_call.1} parent=1 // loop_header
      %s17 = sphi 0, %s21
      %p18 = scmp.ge.s32.totalorder %s17, 4
      %s24 = sphi 0, %s36
      %s25 = sphi 0, %s32
      %s26 = sphi 0, %s24
      %s27 = sphi 0, %s25
      %s28 = sphi 0, %s26
      %s29 = sphi 0, %s27
      %s41 = sphi 0, %s43
      %s44 = sphi 0, %s41
      %s45 = sphi 0, %s44
      %s61 = sphi 0, %s45
      %s69 = sphi 0, %s71
      %s72 = sphi 0, %s69
      %s73 = sphi 0, %s72
      %s89 = sphi 0, %s73
      %s97 = sphi 0, %s99
      %s100 = sphi 0, %s97
      %s101 = sphi 0, %s100
      %s117 = sphi 0, %s101
    $region4: #{tpu_custom_call.1} parent=1 // loop_header_branch
      %20 = sbr.rel (%p18) target = $region8
    $region5: #{tpu_custom_call.1} parent=1 // loop_body
      %s22 = ssub.s32 %s17, 1
      %s23 = ssub.s32 %s17, 2
      %s30 = sadd.s32 1, %s25
      %p31 = scmp.ge.s32.totalorder %s30, 1
      %s32 = scalar_select %p31, 0, %s30
      %s33 = sadd.s32 1, %s24
      %s34 = scalar_select %p31, %s33, %s24
      %p35 = scmp.ge.s32.totalorder %s34, 2
      %s36 = scalar_select %p35, 0, %s34
      %s37 = ssub.s32 %s24, %s36
      %s38 = ssub.s32 %s25, %s32
      %s39 = sor.u32 %s37, %s38
      %p40 = scmp.eq.s32.totalorder %s39, 0
      %s42 = sadd.s32 %s41, 1
      %s43 = scalar_select %p40, %s41, %s42
      %p46 = pneg %p40
      %p47 = scmp.eq.s32.totalorder %s17, 1
      %p48 = por %p46, %p47
      %p49 = scmp.ne.s32.totalorder %s41, %s44
      %p50 = scmp.eq.s32.totalorder %s17, 0
      %p51 = por %p49, %p50
      %p52 = scmp.ne.s32.totalorder %s41, %s44
      %p53 = scmp.eq.s32.totalorder %s22, 1
      %p54 = por %p52, %p53
      %p55 = scmp.ne.s32.totalorder %s44, %s45
      %p56 = scmp.eq.s32.totalorder %s22, 0
      %p57 = por %p55, %p56
      %p58 = scmp.ne.s32.totalorder %s44, %s45
      %p59 = scmp.eq.s32.totalorder %s23, 1
      %p60 = por %p58, %p59
      %p62 = scmp.ne.s32.totalorder %s45, %s61
      %p63 = scmp.eq.s32.totalorder %s23, 0
      %p64 = por %p62, %p63
      %s65 = ssub.s32 %s24, %s36
      %s66 = ssub.s32 %s25, %s32
      %s67 = sor.u32 %s65, %s66
      %p68 = scmp.eq.s32.totalorder %s67, 0
      %s70 = sadd.s32 %s69, 1
      %s71 = scalar_select %p68, %s69, %s70
      %p74 = pneg %p68
      %p75 = scmp.eq.s32.totalorder %s17, 1
      %p76 = por %p74, %p75
      %p77 = scmp.ne.s32.totalorder %s69, %s72
      %p78 = scmp.eq.s32.totalorder %s17, 0
      %p79 = por %p77, %p78
      %p80 = scmp.ne.s32.totalorder %s69, %s72
      %p81 = scmp.eq.s32.totalorder %s22, 1
      %p82 = por %p80, %p81
      %p83 = scmp.ne.s32.totalorder %s72, %s73
      %p84 = scmp.eq.s32.totalorder %s22, 0
      %p85 = por %p83, %p84
      %p86 = scmp.ne.s32.totalorder %s72, %s73
      %p87 = scmp.eq.s32.totalorder %s23, 1
      %p88 = por %p86, %p87
      %p90 = scmp.ne.s32.totalorder %s73, %s89
      %p91 = scmp.eq.s32.totalorder %s23, 0
      %p92 = por %p90, %p91
      %s93 = ssub.s32 %s24, %s36
      %s94 = ssub.s32 %s25, %s32
      %s95 = sor.u32 %s93, %s94
      %p96 = scmp.eq.s32.totalorder %s95, 0
      %s98 = sadd.s32 %s97, 1
      %s99 = scalar_select %p96, %s97, %s98
      %p102 = pneg %p96
      %p103 = scmp.eq.s32.totalorder %s17, 1
      %p104 = por %p102, %p103
      %p105 = scmp.ne.s32.totalorder %s97, %s100
      %p106 = scmp.eq.s32.totalorder %s17, 0
      %p107 = por %p105, %p106
      %p108 = scmp.ne.s32.totalorder %s97, %s100
      %p109 = scmp.eq.s32.totalorder %s22, 1
      %p110 = por %p108, %p109
      %p111 = scmp.ne.s32.totalorder %s100, %s101
      %p112 = scmp.eq.s32.totalorder %s22, 0
      %p113 = por %p111, %p112
      %p114 = scmp.ne.s32.totalorder %s100, %s101
      %p115 = scmp.eq.s32.totalorder %s23, 1
      %p116 = por %p114, %p115
      %p118 = scmp.ne.s32.totalorder %s101, %s117
      %p119 = scmp.eq.s32.totalorder %s23, 0
      %p120 = por %p118, %p119
      %p121 = scmp.le.s32.totalorder 1, %s17
      %p122 = scmp.lt.s32.totalorder %s17, 3
      %p123 = pnand %p121, %p122
      %p124 = pneg %p123
      // Predicated region
      $region9: #{tpu_custom_call.1} parent=5 // pred_check
        _
      $region10: #{tpu_custom_call.1} parent=5 // pred_check_branch
        %126 = sbr.rel (%p123) target = $region12
      $region11: #{tpu_custom_call.1} parent=5 // pred_region
        %s127 = ssub.s32 %s17, 1
      $region12: #{tpu_custom_call.1} parent=5 // pred_fallthru
        _
      %p128 = scmp.lt.s32.totalorder %s17, 2
      // Predicated region
      $region13: #{tpu_custom_call.1} parent=5 // pred_check
        %p129 = pneg %p128
      $region14: #{tpu_custom_call.1} parent=5 // pred_check_branch
        %131 = sbr.rel (%p129) target = $region16
      $region15: #{tpu_custom_call.1} parent=5 // pred_region
        // Predicated region
        $region17: #{tpu_custom_call.1} parent=15 // pred_check
          %p132 = pneg %p51
        $region18: #{tpu_custom_call.1} parent=15 // pred_check_branch
          %134 = sbr.rel (%p132) target = $region20
        $region19: #{tpu_custom_call.1} parent=15 // pred_region
          %s135 = sand.u32 %s41, 1
          %s136 = scalar_lea.sflag [#allocation3], %s135
          %s137 = sand.u32 %s41, 1
          %s138 = smul.addr %s137, 96
          %s139 = scalar_lea.vmem [#allocation2], %s138
          %s141 = ssub.s32 1536, 1536
          %142 = vsyncadd %s136, %s141
          %s143 = smul.addr %s24, 12
          %s144 = sadd.s32 %s25, %s143
          %s145 = smul.addr %s144, 128
          %s146 = scalar_lea.hbm %s0, %s145
          %s147 = sshll.u32 %s139, 4
          %s148 = int_to_ptr.vmem [resolvable:$true] %s147
          %153 = dma.hbm_to_vmem [thread:$0]  %s146, 1536, %s148, %s136, 128, 128, 8
        $region20: #{tpu_custom_call.1} parent=15 // pred_fallthru
          _
        // Predicated region
        $region21: #{tpu_custom_call.1} parent=15 // pred_check
          %p154 = pneg %p79
        $region22: #{tpu_custom_call.1} parent=15 // pred_check_branch
          %156 = sbr.rel (%p154) target = $region24
        $region23: #{tpu_custom_call.1} parent=15 // pred_region
          %s157 = sand.u32 %s69, 1
          %s158 = scalar_lea.sflag [#allocation6], %s157
          %s159 = sand.u32 %s69, 1
          %s160 = smul.addr %s159, 8
          %s161 = scalar_lea.vmem [#allocation5], %s160
          %s163 = ssub.s32 128, 128
          %164 = vsyncadd %s158, %s163
          %s165 = sadd.s32 %s25, %s24
          %s166 = smul.addr %s165, 128
          %s167 = scalar_lea.hbm %s1, %s166
          %s169 = sshll.u32 %s161, 4
          %s170 = int_to_ptr.vmem [resolvable:$true] %s169
          %172 = dma.hbm_to_vmem [thread:$0]  %s167, 128, %s170, %s158
        $region24: #{tpu_custom_call.1} parent=15 // pred_fallthru
          _
      $region16: #{tpu_custom_call.1} parent=5 // pred_fallthru
        _
      %p173 = scmp.le.s32.totalorder 1, %s17
      %p174 = scmp.lt.s32.totalorder %s17, 3
      %p175 = pnand %p173, %p174
      %p176 = pneg %p175
      // Predicated region
      $region25: #{tpu_custom_call.1} parent=5 // pred_check
        _
      $region26: #{tpu_custom_call.1} parent=5 // pred_check_branch
        %178 = sbr.rel (%p175) target = $region28
      $region27: #{tpu_custom_call.1} parent=5 // pred_region
        %s179 = ssub.s32 %s17, 1
        %s180 = sand.u32 %s44, 1
        %s181 = scalar_lea.sflag [#allocation3], %s180
        %s182 = sand.u32 %s44, 1
        %s183 = smul.addr %s182, 96
        %s184 = scalar_lea.vmem [#allocation2], %s183
        // Predicated region
        $region29: #{tpu_custom_call.1} parent=27 // pred_check
          %p185 = pneg %p57
        $region30: #{tpu_custom_call.1} parent=27 // pred_check_branch
          %187 = sbr.rel (%p185) target = $region32
        $region31: #{tpu_custom_call.1} parent=27 // pred_region
          %188 = dma.done %s181, 1536
        $region32: #{tpu_custom_call.1} parent=27 // pred_fallthru
          _
        %s189 = sand.u32 %s72, 1
        %s190 = scalar_lea.sflag [#allocation6], %s189
        %s191 = sand.u32 %s72, 1
        %s192 = smul.addr %s191, 8
        %s193 = scalar_lea.vmem [#allocation5], %s192
        // Predicated region
        $region33: #{tpu_custom_call.1} parent=27 // pred_check
          %p194 = pneg %p85
        $region34: #{tpu_custom_call.1} parent=27 // pred_check_branch
          %196 = sbr.rel (%p194) target = $region36
        $region35: #{tpu_custom_call.1} parent=27 // pred_region
          %197 = dma.done %s190, 128
        $region36: #{tpu_custom_call.1} parent=27 // pred_fallthru
          _
        %s198 = sand.u32 %s44, 1
        %s199 = scalar_lea.sflag [#allocation3], %s198
        %s200 = sand.u32 %s44, 1
        %s201 = smul.addr %s200, 96
        %s202 = scalar_lea.vmem [#allocation2], %s201
        %p203 = pneg %p57
        %p204 = pneg %p54
        %s205 = sand.u32 %s72, 1
        %s206 = scalar_lea.sflag [#allocation6], %s205
        %s207 = sand.u32 %s72, 1
        %s208 = smul.addr %s207, 8
        %s209 = scalar_lea.vmem [#allocation5], %s208
        %p210 = pneg %p85
        %p211 = pneg %p82
        %p212 = pneg %p113
        %p213 = pneg %p110
        %s214 = sand.u32 %s100, 1
        %s215 = scalar_lea.sflag [#allocation4], %s214
        %s216 = sand.u32 %s100, 1
        %s217 = smul.addr %s216, 24
        %s218 = scalar_lea.vmem [#allocation7], %s217
        %s219 = scalar_lea.vmem %s184, 48 [#allocation2]
        %v220 = vld [vmem:[%s219] sm:$0xff]
        %s221 = scalar_lea.vmem %s184, 56 [#allocation2]
        %v222 = vld [vmem:[%s221] sm:$0xff]
        %s223 = scalar_lea.vmem %s184, 64 [#allocation2]
        %v224 = vld [vmem:[%s223] sm:$0xff]
        %v225 = vmul.f32 %v220, %v220
        %v226 = vmul.f32 %v222, %v222
        %v227 = vadd.f32 %v225, %v226
        %v228 = vmul.f32 %v224, %v224
        %v229 = vadd.f32 %v227, %v228
        %v230 = vmax.f32 %v229, 1e-24
        %v231 = vrsqrt.pop %v230
        %v232 = vmul.f32 %v220, %v231
        %v233 = vmul.f32 %v222, %v231
        %v234 = vmul.f32 %v224, %v231
        %s235 = scalar_lea.vmem %s184, 72 [#allocation2]
        %v236 = vld [vmem:[%s235] sm:$0xff]
        %s237 = scalar_lea.vmem %s184, 80 [#allocation2]
        %v238 = vld [vmem:[%s237] sm:$0xff]
        %s239 = scalar_lea.vmem %s184, 88 [#allocation2]
        %v240 = vld [vmem:[%s239] sm:$0xff]
        %v241 = vmul.f32 %v236, %v236
        %v242 = vmul.f32 %v238, %v238
        %v243 = vadd.f32 %v241, %v242
        %v244 = vmul.f32 %v240, %v240
        %v245 = vadd.f32 %v243, %v244
        %v246 = vmax.f32 %v245, 1e-24
        %v247 = vrsqrt.pop %v246
        %v248 = vmul.f32 %v236, %v247
        %v249 = vmul.f32 %v238, %v247
        %v250 = vmul.f32 %v240, %v247
        %v251 = vmul.f32 %v233, %v250
        %v252 = vmul.f32 %v234, %v249
        %v253 = vsub.f32 %v251, %v252
        %v254 = vmul.f32 %v234, %v248
        %v255 = vmul.f32 %v232, %v250
        %v256 = vsub.f32 %v254, %v255
        %v257 = vmul.f32 %v232, %v249
        %v258 = vmul.f32 %v233, %v248
        %v259 = vsub.f32 %v257, %v258
        %v260 = vmul.f32 %v253, %v253
        %v261 = vmul.f32 %v256, %v256
        %v262 = vadd.f32 %v260, %v261
        %v263 = vmul.f32 %v259, %v259
        %v264 = vadd.f32 %v262, %v263
        %v265 = vmax.f32 %v264, 1e-24
        %v266 = vrsqrt.pop %v265
        %v267 = vmul.f32 %v253, %v266
        %v268 = vmul.f32 %v256, %v266
        %v269 = vmul.f32 %v259, %v266
        %v270 = vld [vmem:[%s184] sm:$0xff]
        %s271 = scalar_lea.vmem %s184, 8 [#allocation2]
        %v272 = vld [vmem:[%s271] sm:$0xff]
        %s273 = scalar_lea.vmem %s184, 16 [#allocation2]
        %v274 = vld [vmem:[%s273] sm:$0xff]
        %s275 = scalar_lea.vmem %s184, 24 [#allocation2]
        %v276 = vld [vmem:[%s275] sm:$0xff]
        %s277 = scalar_lea.vmem %s184, 32 [#allocation2]
        %v278 = vld [vmem:[%s277] sm:$0xff]
        %s279 = scalar_lea.vmem %s184, 40 [#allocation2]
        %v280 = vld [vmem:[%s279] sm:$0xff]
        %v281 = vmul.f32 %v270, %v270
        %v282 = vmul.f32 %v272, %v272
        %v283 = vadd.f32 %v281, %v282
        %v284 = vmul.f32 %v274, %v274
        %v285 = vadd.f32 %v283, %v284
        %v286 = vmax.f32 %v285, 1e-24
        %v287 = vrsqrt.pop %v286
        %v288 = vmul.f32 %v270, %v287
        %v289 = vmul.f32 %v272, %v287
        %v290 = vmul.f32 %v274, %v287
        %v291 = vmul.f32 %v276, %v276
        %v292 = vmul.f32 %v278, %v278
        %v293 = vadd.f32 %v291, %v292
        %v294 = vmul.f32 %v280, %v280
        %v295 = vadd.f32 %v293, %v294
        %v296 = vmax.f32 %v295, 1e-24
        %v297 = vrsqrt.pop %v296
        %v298 = vmul.f32 %v276, %v297
        %v299 = vmul.f32 %v278, %v297
        %v300 = vmul.f32 %v280, %v297
        %v301 = vsub.f32 %v276, %v270
        %v302 = vsub.f32 %v278, %v272
        %v303 = vsub.f32 %v280, %v274
        %v304 = vmul.f32 %v301, %v301
        %v305 = vmul.f32 %v302, %v302
        %v306 = vadd.f32 %v304, %v305
        %v307 = vmul.f32 %v303, %v303
        %v308 = vadd.f32 %v306, %v307
        %v309 = vmax.f32 %v308, 1e-24
        %v310 = vrsqrt.pop %v309
        %v311 = vmul.f32 %v301, %v310
        %v312 = vmul.f32 %v302, %v310
        %v313 = vmul.f32 %v303, %v310
        %v314 = vld [vmem:[%s193] sm:$0xff]
        %v315 = vmul.f32 %v288, %v267
        %v316 = vmul.f32 %v289, %v268
        %v317 = vadd.f32 %v315, %v316
        %v318 = vmul.f32 %v290, %v269
        %v319 = vadd.f32 %v317, %v318
        %v320 = vand.u32 2147483647, %v319
        %v321 = vmul.f32 %v320, %v314
        %322 = vst [vmem:[%s218] sm:$0xff] %v321
        %v323 = vmul.f32 %v298, %v267
        %v324 = vmul.f32 %v299, %v268
        %v325 = vadd.f32 %v323, %v324
        %v326 = vmul.f32 %v300, %v269
        %v327 = vadd.f32 %v325, %v326
        %v328 = vand.u32 2147483647, %v327
        %v329 = vmul.f32 %v328, %v314
        %s330 = scalar_lea.vmem %s218, 8 [#allocation7]
        %331 = vst [vmem:[%s330] sm:$0xff] %v329
        %v332 = vmul.f32 %v311, %v267
        %v333 = vmul.f32 %v312, %v268
        %v334 = vadd.f32 %v332, %v333
        %v335 = vmul.f32 %v313, %v269
        %v336 = vadd.f32 %v334, %v335
        %v337 = vand.u32 2147483647, %v336
        %v338 = vmul.f32 %v337, %v314
        %s339 = scalar_lea.vmem %s218, 16 [#allocation7]
        %340 = vst [vmem:[%s339] sm:$0xff] %v338
        %s341 = sand.u32 %s100, 1
        %s342 = scalar_lea.sflag [#allocation4], %s341
        %s343 = sand.u32 %s100, 1
        %s344 = smul.addr %s343, 24
        %s345 = scalar_lea.vmem [#allocation7], %s344
        // Predicated region
        $region37: #{tpu_custom_call.1} parent=27 // pred_check
          %p346 = pneg %p110
        $region38: #{tpu_custom_call.1} parent=27 // pred_check_branch
          %348 = sbr.rel (%p346) target = $region40
        $region39: #{tpu_custom_call.1} parent=27 // pred_region
          %s350 = ssub.s32 384, 384
          %351 = vsyncadd %s342, %s350
          %s352 = smul.addr %s26, 3
          %s353 = sadd.s32 %s27, %s352
          %s354 = smul.addr %s353, 128
          %s355 = scalar_lea.hbm %s2, %s354
          %s356 = sshll.u32 %s345, 4
          %s357 = int_to_ptr.vmem [resolvable:$true] %s356
          %362 = dma.vmem_to_hbm [thread:$0]  %s357, 384, %s355, %s342, 128, 128, 8
        $region40: #{tpu_custom_call.1} parent=27 // pred_fallthru
          _
      $region28: #{tpu_custom_call.1} parent=5 // pred_fallthru
        _
      %p363 = scmp.le.s32.totalorder 2, %s17
      // Predicated region
      $region41: #{tpu_custom_call.1} parent=5 // pred_check
        %p364 = pneg %p363
      $region42: #{tpu_custom_call.1} parent=5 // pred_check_branch
        %366 = sbr.rel (%p364) target = $region44
      $region43: #{tpu_custom_call.1} parent=5 // pred_region
        %s367 = ssub.s32 %s17, 2
        // Predicated region
        $region45: #{tpu_custom_call.1} parent=43 // pred_check
          %p368 = pneg %p116
        $region46: #{tpu_custom_call.1} parent=43 // pred_check_branch
          %370 = sbr.rel (%p368) target = $region48
        $region47: #{tpu_custom_call.1} parent=43 // pred_region
          %s371 = sand.u32 %s101, 1
          %s372 = scalar_lea.sflag [#allocation4], %s371
          %s373 = sand.u32 %s101, 1
          %s374 = smul.addr %s373, 24
          %s375 = scalar_lea.vmem [#allocation7], %s374
          %376 = dma.done %s372, 384
        $region48: #{tpu_custom_call.1} parent=43 // pred_fallthru
          _
      $region44: #{tpu_custom_call.1} parent=5 // pred_fallthru
        _
    $region6: #{tpu_custom_call.1} parent=1 // loop_footer
      %s21 = sadd.s32 1, %s17
    $region7: #{tpu_custom_call.1} parent=1 // loop_footer_branch
      %16 = sbr.rel target = $region3
    $region8: #{tpu_custom_call.1} parent=1 // loop_exit
      _
    %377 = vsyncpa [#allocation3], 1
    %s378 = scalar_lea.sflag [#allocation3], 1
    %379 = vsyncpa %s378, 1
    %380 = vsyncpa [#allocation6], 1
    %s381 = scalar_lea.sflag [#allocation6], 1
    %382 = vsyncpa %s381, 1
    %383 = vsyncpa [#allocation4], 1
    %s384 = scalar_lea.sflag [#allocation4], 1
    %385 = vsyncpa %s384, 1

</llo_original>
